<compile_context>
chip_gen: v5e
topology: v5e:2x2
jax: 0.10.0
libtpu: 0.0.40
codegen_flags: <defaults>
</compile_context>

<pallas_src>
import functools

import jax
import jax.numpy as jnp
from jax.experimental import pallas as pl
from jax.experimental.pallas import tpu as pltpu

BN_EPS = 1e-5                       # PyTorch BatchNorm1d default
_VMEM_BUDGET = 44 * 1024 * 1024     # double-buffered working-set cap (v7x VMEM = 64 MiB)


def _round_up(x, m):
    return (x + m - 1) // m * m


def _k_tiling(d):
    """K tile (multiple of 128, <= 512), preferring a divisor of d so the flattened
    activation needs no K padding (saves a pad pass over x in HBM)."""
    for cand in (512, 256, 128):
        if d % cand == 0:
            return cand, d
    tk = min(512, _round_up(d, 128))
    return tk, _round_up(d, tk)


def _vmem_need_a(tile_b, tile_k, hp):
    # double-buffered x, w1, h(bf16), stats  +  single resident f32 accumulator
    return (2 * (tile_b * tile_k * 2 + tile_k * hp * 2 + tile_b * hp * 2 + 8 * hp * 4)
            + tile_b * hp * 4)


def _vmem_need_b(tile_b, hp, lp):
    return 2 * (tile_b * hp * 2 + 2 * hp * 4 + hp * lp * 2 + lp * 4 + tile_b * lp * 4)


def _vmem_limit(need):
    # 25% + 2 MiB headroom for compiler-internal scratch; floor at the 32 MiB
    # default; cap at 60 MiB so the limit stays below v7x's 64 MiB physical VMEM.
    return int(min(max(need + need // 4 + (2 << 20), 32 << 20), 60 << 20))


def _hidden_stats_kernel(x_ref, w1_ref, h_ref, stats_ref, acc_ref):
    """Grid (nb, nk): acc(f32) += x_tile @ w1_tile over K; on the last K step write
    the hidden activation (bf16) and this batch tile's (sum, sumsq) partials, both
    derived from the f32 accumulator (not the bf16-rounded values)."""
    k = pl.program_id(1)
    nk = pl.num_programs(1)

    @pl.when(k == 0)
    def _():
        acc_ref[...] = jnp.zeros_like(acc_ref)
        stats_ref[...] = jnp.zeros_like(stats_ref)

    # bf16 inputs, f32 accumulation on the MXU.
    acc_ref[...] += jnp.dot(x_ref[...], w1_ref[...],
                            preferred_element_type=jnp.float32)

    @pl.when(k == nk - 1)
    def _():
        acc = acc_ref[...]
        h_ref[...] = acc.astype(h_ref.dtype)
        # Zero-padded batch rows contribute exactly 0 (no bias is ever added; the
        # Linear-1 bias cancels under train-mode BN and was folded away).
        # Single-pass (sum, sumsq); variance is finalized in f32 outside.
        stats_ref[0:1, :] = jnp.sum(acc, axis=0, keepdims=True)
        stats_ref[1:2, :] = jnp.sum(acc * acc, axis=0, keepdims=True)


def _bn_relu_out_kernel(h_ref, scale_ref, shift_ref, w2_ref, b2_ref, o_ref):
    """Grid (nb,): out = relu(h * scale + shift) @ w2 + b2 (fused BN affine)."""
    act = jnp.maximum(
        h_ref[...].astype(jnp.float32) * scale_ref[...] + shift_ref[...], 0.0)
    out = jnp.dot(act.astype(jnp.bfloat16), w2_ref[...],
                  preferred_element_type=jnp.float32)
    o_ref[...] = (out + b2_ref[...]).astype(o_ref.dtype)


def prepare_params(w1, b1, gamma, beta, w2, b2):
    """Pad + cast the weights ONCE, outside the per-call jitted forward (avoids
    re-reading/re-writing the largest tensors on every call of a memory-bound
    pipeline)."""
    D, H = w1.shape
    L = w2.shape[1]
    _, DP = _k_tiling(D)
    HP = _round_up(H, 128)
    LP = _round_up(L, 128)
    # b1 cancels exactly under train-mode BatchNorm (it only shifts the per-feature
    # batch mean, which BN subtracts) -> folded away.  Only valid for train-mode
    # (batch-statistics) BN, which is what the reference module's forward uses.
    del b1
    w1_p = jnp.pad(w1.astype(jnp.float32),
                   ((0, DP - D), (0, HP - H))).astype(jnp.bfloat16)
    w2_p = jnp.pad(w2.astype(jnp.float32),
                   ((0, HP - H), (0, LP - L))).astype(jnp.bfloat16)
    gamma_p = jnp.pad(gamma.astype(jnp.float32), (0, HP - H))
    beta_p = jnp.pad(beta.astype(jnp.float32), (0, HP - H))
    b2_p = jnp.pad(b2.astype(jnp.float32), (0, LP - L)).reshape(1, LP)
    return w1_p, gamma_p, beta_p, w2_p, b2_p


@functools.partial(jax.jit, static_argnames=("label_count",))
def mlp_forward(x_nchw, w1_p, gamma_p, beta_p, w2_p, b2_p, *, label_count):
    """x_nchw: (B, C, H, W) float32; padded/cast weights from prepare_params.
    Returns (B, label_count) float32."""
    B = x_nchw.shape[0]
    x_flat = x_nchw.reshape(B, -1)            # nn.Flatten (C, H, W row-major order)
    D = x_flat.shape[1]

    DP, HP = w1_p.shape
    LP = w2_p.shape[1]
    TILE_K, DP_check = _k_tiling(D)
    assert DP == DP_check, "weights were prepared for a different input size"

    # ---- batch tiling: large tiles (amortize the w1 stream), >= 2 tiles for big
    # batches (keeps both v7x TensorCores busy), bounded by the VMEM budget. ----
    BQ = _round_up(B, 16)                     # 16-row quantum (bf16 sublane packing)
    if BQ <= 256:
        TILE_B = BQ
    else:
        ntiles = max(2, -(-BQ // 512))        # target 256-512 rows per tile
        TILE_B = _round_up(-(-BQ // ntiles), 16)
    while TILE_B > 16 and _vmem_need_a(TILE_B, TILE_K, HP) > _VMEM_BUDGET:
        TILE_B = max(16, _round_up(TILE_B // 2, 16))
    # (If HP were so large that even TILE_B=16 overflows the budget, an HP grid
    #  axis would be needed; unnecessary for typical MLP hidden sizes.)
    BP = _round_up(B, TILE_B)
    nb = BP // TILE_B
    nk = DP // TILE_K

    # Pad x only when the tiling requires it; the bf16 cast fuses in XLA.
    if BP != B or DP != D:
        x_p = jnp.pad(x_flat, ((0, BP - B), (0, DP - D))).astype(jnp.bfloat16)
    else:
        x_p = x_flat.astype(jnp.bfloat16)

    # ---- Kernel A: hidden matmul + per-batch-tile BN statistic partials ----
    h_raw, stats = pl.pallas_call(
        _hidden_stats_kernel,
        out_shape=(jax.ShapeDtypeStruct((BP, HP), jnp.bfloat16),
                   jax.ShapeDtypeStruct((nb, 8, HP), jnp.float32)),
        grid_spec=pltpu.PrefetchScalarGridSpec(
            num_scalar_prefetch=0,
            grid=(nb, nk),
            in_specs=[
                pl.BlockSpec((TILE_B, TILE_K), lambda b, k: (b, k)),   # x
                pl.BlockSpec((TILE_K, HP), lambda b, k: (k, 0)),       # w1
            ],
            out_specs=[
                pl.BlockSpec((TILE_B, HP), lambda b, k: (b, 0)),       # h (K-resident)
                pl.BlockSpec((pl.Squeezed(), 8, HP),
                             lambda b, k: (b, 0, 0)),                  # per-tile stats
            ],
            scratch_shapes=[pltpu.VMEM((TILE_B, HP), jnp.float32)],    # f32 accumulator
        ),
        compiler_params=pltpu.CompilerParams(
            dimension_semantics=("parallel", "arbitrary"),   # batch  x  K-reduction
            vmem_limit_bytes=_vmem_limit(_vmem_need_a(TILE_B, TILE_K, HP))),
        cost_estimate=pl.CostEstimate(
            flops=2 * BP * DP * HP,
            transcendentals=0,
            bytes_accessed=(BP * DP * 2 + nb * DP * HP * 2
                            + BP * HP * 2 + nb * 8 * HP * 4)),
    )(x_p, w1_p)

    # ---- Tiny finalize in plain JAX (2*nb*HP elems): fused BN affine (f32) ----
    inv_n = 1.0 / B
    mean = jnp.sum(stats[:, 0, :], axis=0) * inv_n
    var = jnp.maximum(jnp.sum(stats[:, 1, :], axis=0) * inv_n - mean * mean, 0.0)
    scale_v = gamma_p * jax.lax.rsqrt(var + BN_EPS)      # gamma / std
    shift_v = beta_p - scale_v * mean                    # folds the BN shift
    scale = scale_v.reshape(1, HP)
    shift = shift_v.reshape(1, HP)

    # ---- Kernel B: BN affine + ReLU + output matmul (batch-parallel) ----
    out_p = pl.pallas_call(
        _bn_relu_out_kernel,
        out_shape=jax.ShapeDtypeStruct((BP, LP), jnp.float32),
        grid_spec=pltpu.PrefetchScalarGridSpec(
            num_scalar_prefetch=0,
            grid=(nb,),
            in_specs=[
                pl.BlockSpec((TILE_B, HP), lambda b: (b, 0)),   # h (bf16)
                pl.BlockSpec((1, HP), lambda b: (0, 0)),        # scale
                pl.BlockSpec((1, HP), lambda b: (0, 0)),        # shift
                pl.BlockSpec((HP, LP), lambda b: (0, 0)),       # w2
                pl.BlockSpec((1, LP), lambda b: (0, 0)),        # b2
            ],
            out_specs=pl.BlockSpec((TILE_B, LP), lambda b: (b, 0)),
        ),
        compiler_params=pltpu.CompilerParams(
            dimension_semantics=("parallel",),
            vmem_limit_bytes=_vmem_limit(_vmem_need_b(TILE_B, HP, LP))),
        cost_estimate=pl.CostEstimate(
            flops=2 * BP * HP * LP,
            transcendentals=0,
            bytes_accessed=(BP * HP * 2 + HP * LP * 2 + BP * LP * 4
                            + 2 * HP * 4 + LP * 4)),
    )(h_raw, scale, shift, w2_p, b2_p)

    return out_p[:B, :label_count]


def init_params(key, input_size, hl_size, label_count):
    """Deterministic synthetic params matching nn.Linear / nn.BatchNorm1d shapes."""
    k1, k2, k3, k4 = jax.random.split(key, 4)
    lim1 = 1.0 / jnp.sqrt(input_size)
    lim2 = 1.0 / jnp.sqrt(hl_size)
    # Stored as (in_features, out_features) (transposed vs. PyTorch) for row-major matmul.
    w1 = jax.random.uniform(k1, (input_size, hl_size), jnp.float32, -lim1, lim1)
    b1 = jax.random.uniform(k2, (hl_size,), jnp.float32, -lim1, lim1)
    gamma = jnp.ones((hl_size,), jnp.float32)    # BatchNorm1d weight init
    beta = jnp.zeros((hl_size,), jnp.float32)    # BatchNorm1d bias init
    w2 = jax.random.uniform(k3, (hl_size, label_count), jnp.float32, -lim2, lim2)
    b2 = jax.random.uniform(k4, (label_count,), jnp.float32, -lim2, lim2)
    return w1, b1, gamma, beta, w2, b2


if __name__ == "__main__":
    # Small shapes consistent with the module's forward.
    batch, channels, img_h, img_w = 2, 4, 16, 16
    hl_size, label_count = 32, 5
    input_size = channels * img_h * img_w

    key = jax.random.PRNGKey(0)
    kx, kp = jax.random.split(key)
    x = jax.random.normal(kx, (batch, channels, img_h, img_w), jnp.float32)
    w1, b1, gamma, beta, w2, b2 = init_params(kp, input_size, hl_size, label_count)

    # Weight padding/casting hoisted out of the hot path (done once).
    padded = prepare_params(w1, b1, gamma, beta, w2, b2)

    out = mlp_forward(x, *padded, label_count=label_count)
    out = jax.block_until_ready(out)
    assert out.shape == (batch, label_count), out.shape

    # Reference mirroring the kernel's precision choices: bf16 MXU inputs with f32
    # accumulation, single-pass f32 train-mode BatchNorm statistics, bf16-stored
    # hidden activation.  b1 is omitted because it cancels exactly under
    # train-mode (batch-statistic) BatchNorm.
    xf = x.reshape(batch, -1)
    h = jnp.dot(xf.astype(jnp.bfloat16), w1.astype(jnp.bfloat16),
                preferred_element_type=jnp.float32)
    mean = h.mean(axis=0)
    var = jnp.maximum((h * h).mean(axis=0) - mean * mean, 0.0)
    scale = gamma * jax.lax.rsqrt(var + BN_EPS)
    shift = beta - scale * mean
    h_q = h.astype(jnp.bfloat16).astype(jnp.float32)     # hidden stored as bf16
    act = jnp.maximum(h_q * scale + shift, 0.0)
    ref = jnp.dot(act.astype(jnp.bfloat16), w2.astype(jnp.bfloat16),
                  preferred_element_type=jnp.float32) + b2

    assert jnp.allclose(out, ref, atol=5e-3, rtol=5e-3), (out, ref)
    print("KERNEL_OK")
</pallas_src>

<mosaic_0001>
module attributes {stable_mosaic.version = 11 : i64} {
  func.func @_hidden_stats_kernel(%arg0: i32, %arg1: i32, %arg2: memref<16x512xbf16, #tpu.memory_space<vmem>>, %arg3: memref<512x128xbf16, #tpu.memory_space<vmem>>, %arg4: memref<16x128xbf16, #tpu.memory_space<vmem>>, %arg5: memref<1x8x128xf32, #tpu.memory_space<vmem>>, %arg6: memref<16x128xf32, #tpu.memory_space<vmem>>) attributes {dimension_semantics = [#tpu.dimension_semantics<parallel>, #tpu.dimension_semantics<arbitrary>], iteration_bounds = array<i64: 1, 2>, scalar_prefetch = 0 : i64, scratch_operands = 1 : i64, tpu.core_type = #tpu.core_type<tc>, window_params = [{transform_indices = @transform_0, window_bounds = array<i64: 16, 512>}, {transform_indices = @transform_1, window_bounds = array<i64: 512, 128>}, {transform_indices = @transform_2, window_bounds = array<i64: 16, 128>}, {transform_indices = @transform_3, window_bounds = array<i64: 1, 8, 128>}]} {
    %c0_i32 = arith.constant 0 : i32
    %0 = arith.cmpi eq, %arg1, %c0_i32 : i32
    %1 = arith.extui %0 : i1 to i32
    %c0_i32_0 = arith.constant 0 : i32
    %2 = arith.cmpi ne, %1, %c0_i32_0 : i32
    scf.if %2 {
      %cst_9 = arith.constant 0.000000e+00 : f32
      %12 = vector.broadcast %cst_9 : f32 to vector<16x128xf32>
      %c0_10 = arith.constant 0 : index
      %c0_11 = arith.constant 0 : index
      %13 = vector.load %arg6[%c0_10, %c0_11] : memref<16x128xf32, #tpu.memory_space<vmem>>, vector<16x128xf32>
      tpu.vector_store %arg6[%c0_10, %c0_11], %12 {strides = array<i32>} : memref<16x128xf32, #tpu.memory_space<vmem>>, vector<16x128xf32>,
      %cst_12 = arith.constant 0.000000e+00 : f32
      %14 = vector.broadcast %cst_12 : f32 to vector<8x128xf32>
      %c0_13 = arith.constant 0 : index
      %c0_14 = arith.constant 0 : index
      %c0_15 = arith.constant 0 : index
      %15 = vector.load %arg5[%c0_13, %c0_14, %c0_15] : memref<1x8x128xf32, #tpu.memory_space<vmem>>, vector<1x8x128xf32>
      %16 = vector.shape_cast %15 : vector<1x8x128xf32> to vector<8x128xf32>
      %17 = vector.shape_cast %14 : vector<8x128xf32> to vector<1x8x128xf32>
      tpu.vector_store %arg5[%c0_13, %c0_14, %c0_15], %17 {strides = array<i32>} : memref<1x8x128xf32, #tpu.memory_space<vmem>>, vector<1x8x128xf32>,
    } else {
    }
    %c0 = arith.constant 0 : index
    %c0_1 = arith.constant 0 : index
    %3 = vector.load %arg6[%c0, %c0_1] : memref<16x128xf32, #tpu.memory_space<vmem>>, vector<16x128xf32>
    %c0_2 = arith.constant 0 : index
    %c0_3 = arith.constant 0 : index
    %4 = vector.load %arg2[%c0_2, %c0_3] : memref<16x512xbf16, #tpu.memory_space<vmem>>, vector<16x512xbf16>
    %c0_4 = arith.constant 0 : index
    %c0_5 = arith.constant 0 : index
    %5 = vector.load %arg3[%c0_4, %c0_5] : memref<512x128xbf16, #tpu.memory_space<vmem>>, vector<512x128xbf16>
    %cst = arith.constant dense<0.000000e+00> : vector<16x128xf32>
    %6 = tpu.matmul %4, %5, %cst {dimension_numbers = #tpu.dot_dimension_numbers<[1], [0], [0], [1], [0, 0, 1, 1], [], []>} : vector<16x512xbf16>, vector<512x128xbf16>, vector<16x128xf32> -> vector<16x128xf32>
    %7 = arith.addf %3, %6 : vector<16x128xf32>
    %c0_6 = arith.constant 0 : index
    %c0_7 = arith.constant 0 : index
    %8 = vector.load %arg6[%c0_6, %c0_7] : memref<16x128xf32, #tpu.memory_space<vmem>>, vector<16x128xf32>
    tpu.vector_store %arg6[%c0_6, %c0_7], %7 {strides = array<i32>} : memref<16x128xf32, #tpu.memory_space<vmem>>, vector<16x128xf32>,
    %c1_i32 = arith.constant 1 : i32
    %9 = arith.cmpi eq, %arg1, %c1_i32 : i32
    %10 = arith.extui %9 : i1 to i32
    %c0_i32_8 = arith.constant 0 : i32
    %11 = arith.cmpi ne, %10, %c0_i32_8 : i32
    scf.if %11 {
      %c0_9 = arith.constant 0 : index
      %c0_10 = arith.constant 0 : index
      %12 = vector.load %arg6[%c0_9, %c0_10] : memref<16x128xf32, #tpu.memory_space<vmem>>, vector<16x128xf32>
      %13 = arith.truncf %12 : vector<16x128xf32> to vector<16x128xbf16>
      %c0_11 = arith.constant 0 : index
      %c0_12 = arith.constant 0 : index
      %14 = vector.load %arg4[%c0_11, %c0_12] : memref<16x128xbf16, #tpu.memory_space<vmem>>, vector<16x128xbf16>
      tpu.vector_store %arg4[%c0_11, %c0_12], %13 {strides = array<i32>} : memref<16x128xbf16, #tpu.memory_space<vmem>>, vector<16x128xbf16>,
      %cst_13 = arith.constant dense<0.000000e+00> : vector<128xf32>
      %15 = vector.multi_reduction <add>, %12, %cst_13 [0] : vector<16x128xf32> to vector<128xf32>
      %16 = vector.shape_cast %15 : vector<128xf32> to vector<1x128xf32>
      %c0_14 = arith.constant 0 : index
      %c0_15 = arith.constant 0 : index
      %c0_16 = arith.constant 0 : index
      %17 = vector.load %arg5[%c0_14, %c0_15, %c0_16] : memref<1x8x128xf32, #tpu.memory_space<vmem>>, vector<1x1x128xf32>
      %18 = vector.shape_cast %17 : vector<1x1x128xf32> to vector<1x128xf32>
      %19 = vector.shape_cast %16 : vector<1x128xf32> to vector<1x1x128xf32>
      tpu.vector_store %arg5[%c0_14, %c0_15, %c0_16], %19 {strides = array<i32>} : memref<1x8x128xf32, #tpu.memory_space<vmem>>, vector<1x1x128xf32>,
      %20 = arith.mulf %12, %12 : vector<16x128xf32>
      %cst_17 = arith.constant dense<0.000000e+00> : vector<128xf32>
      %21 = vector.multi_reduction <add>, %20, %cst_17 [0] : vector<16x128xf32> to vector<128xf32>
      %22 = vector.shape_cast %21 : vector<128xf32> to vector<1x128xf32>
      %c0_18 = arith.constant 0 : index
      %c1 = arith.constant 1 : index
      %c0_19 = arith.constant 0 : index
      %23 = vector.load %arg5[%c0_18, %c1, %c0_19] : memref<1x8x128xf32, #tpu.memory_space<vmem>>, vector<1x1x128xf32>
      %24 = vector.shape_cast %23 : vector<1x1x128xf32> to vector<1x128xf32>
      %25 = vector.shape_cast %22 : vector<1x128xf32> to vector<1x1x128xf32>
      tpu.vector_store %arg5[%c0_18, %c1, %c0_19], %25 {strides = array<i32>} : memref<1x8x128xf32, #tpu.memory_space<vmem>>, vector<1x1x128xf32>,
    } else {
    }
    return
  }
  func.func @transform_0(%arg0: i32, %arg1: i32) -> (i32, i32) {
    %c0_i32 = arith.constant 0 : i32
    return %arg0, %arg1 : i32, i32
  }
  func.func @transform_1(%arg0: i32, %arg1: i32) -> (i32, i32) {
    %c0_i32 = arith.constant 0 : i32
    %c0_i32_0 = arith.constant 0 : i32
    return %arg1, %c0_i32 : i32, i32
  }
  func.func @transform_2(%arg0: i32, %arg1: i32) -> (i32, i32) {
    %c0_i32 = arith.constant 0 : i32
    %c0_i32_0 = arith.constant 0 : i32
    return %arg0, %c0_i32 : i32, i32
  }
  func.func @transform_3(%arg0: i32, %arg1: i32) -> (i32, i32, i32) {
    %c0_i32 = arith.constant 0 : i32
    %c0_i32_0 = arith.constant 0 : i32
    %c0_i32_1 = arith.constant 0 : i32
    return %arg0, %c0_i32, %c0_i32_0 : i32, i32, i32
  }
}

module attributes {stable_mosaic.version = 11 : i64} {
  func.func @_bn_relu_out_kernel(%arg0: i32, %arg1: memref<16x128xbf16, #tpu.memory_space<vmem>>, %arg2: memref<1x128xf32, #tpu.memory_space<vmem>>, %arg3: memref<1x128xf32, #tpu.memory_space<vmem>>, %arg4: memref<128x128xbf16, #tpu.memory_space<vmem>>, %arg5: memref<1x128xf32, #tpu.memory_space<vmem>>, %arg6: memref<16x128xf32, #tpu.memory_space<vmem>>) attributes {dimension_semantics = [#tpu.dimension_semantics<parallel>], iteration_bounds = array<i64: 1>, scalar_prefetch = 0 : i64, scratch_operands = 0 : i64, tpu.core_type = #tpu.core_type<tc>, window_params = [{transform_indices = @transform_0, window_bounds = array<i64: 16, 128>}, {pipeline_mode = #tpu.pipeline_mode<synchronous>, transform_indices = @transform_1, window_bounds = array<i64: 1, 128>}, {pipeline_mode = #tpu.pipeline_mode<synchronous>, transform_indices = @transform_2, window_bounds = array<i64: 1, 128>}, {pipeline_mode = #tpu.pipeline_mode<synchronous>, transform_indices = @transform_3, window_bounds = array<i64: 128, 128>}, {pipeline_mode = #tpu.pipeline_mode<synchronous>, transform_indices = @transform_4, window_bounds = array<i64: 1, 128>}, {transform_indices = @transform_5, window_bounds = array<i64: 16, 128>}]} {
    %c0 = arith.constant 0 : index
    %c0_0 = arith.constant 0 : index
    %0 = vector.load %arg1[%c0, %c0_0] : memref<16x128xbf16, #tpu.memory_space<vmem>>, vector<16x128xbf16>
    %1 = arith.extf %0 : vector<16x128xbf16> to vector<16x128xf32>
    %c0_1 = arith.constant 0 : index
    %c0_2 = arith.constant 0 : index
    %2 = vector.load %arg2[%c0_1, %c0_2] : memref<1x128xf32, #tpu.memory_space<vmem>>, vector<1x128xf32>
    %3 = vector.broadcast %2 : vector<1x128xf32> to vector<16x128xf32>
    %4 = arith.mulf %1, %3 : vector<16x128xf32>
    %c0_3 = arith.constant 0 : index
    %c0_4 = arith.constant 0 : index
    %5 = vector.load %arg3[%c0_3, %c0_4] : memref<1x128xf32, #tpu.memory_space<vmem>>, vector<1x128xf32>
    %6 = vector.broadcast %5 : vector<1x128xf32> to vector<16x128xf32>
    %7 = arith.addf %4, %6 : vector<16x128xf32>
    %cst = arith.constant 0.000000e+00 : f32
    %8 = vector.broadcast %cst : f32 to vector<16x128xf32>
    %9 = arith.maximumf %7, %8 : vector<16x128xf32>
    %10 = arith.truncf %9 : vector<16x128xf32> to vector<16x128xbf16>
    %c0_5 = arith.constant 0 : index
    %c0_6 = arith.constant 0 : index
    %11 = vector.load %arg4[%c0_5, %c0_6] : memref<128x128xbf16, #tpu.memory_space<vmem>>, vector<128x128xbf16>
    %cst_7 = arith.constant dense<0.000000e+00> : vector<16x128xf32>
    %12 = tpu.matmul %10, %11, %cst_7 {dimension_numbers = #tpu.dot_dimension_numbers<[1], [0], [0], [1], [0, 0, 1, 1], [], []>} : vector<16x128xbf16>, vector<128x128xbf16>, vector<16x128xf32> -> vector<16x128xf32>
    %c0_8 = arith.constant 0 : index
    %c0_9 = arith.constant 0 : index
    %13 = vector.load %arg5[%c0_8, %c0_9] : memref<1x128xf32, #tpu.memory_space<vmem>>, vector<1x128xf32>
    %14 = vector.broadcast %13 : vector<1x128xf32> to vector<16x128xf32>
    %15 = arith.addf %12, %14 : vector<16x128xf32>
    %c0_10 = arith.constant 0 : index
    %c0_11 = arith.constant 0 : index
    %16 = vector.load %arg6[%c0_10, %c0_11] : memref<16x128xf32, #tpu.memory_space<vmem>>, vector<16x128xf32>
    tpu.vector_store %arg6[%c0_10, %c0_11], %15 {strides = array<i32>} : memref<16x128xf32, #tpu.memory_space<vmem>>, vector<16x128xf32>,
    return
  }
  func.func @transform_0(%arg0: i32) -> (i32, i32) {
    %c0_i32 = arith.constant 0 : i32
    %c0_i32_0 = arith.constant 0 : i32
    return %arg0, %c0_i32 : i32, i32
  }
  func.func @transform_1(%arg0: i32) -> (i32, i32) {
    %c0_i32 = arith.constant 0 : i32
    %c0_i32_0 = arith.constant 0 : i32
    %c0_i32_1 = arith.constant 0 : i32
    return %c0_i32, %c0_i32_0 : i32, i32
  }
  func.func @transform_2(%arg0: i32) -> (i32, i32) {
    %c0_i32 = arith.constant 0 : i32
    %c0_i32_0 = arith.constant 0 : i32
    %c0_i32_1 = arith.constant 0 : i32
    return %c0_i32, %c0_i32_0 : i32, i32
  }
  func.func @transform_3(%arg0: i32) -> (i32, i32) {
    %c0_i32 = arith.constant 0 : i32
    %c0_i32_0 = arith.constant 0 : i32
    %c0_i32_1 = arith.constant 0 : i32
    return %c0_i32, %c0_i32_0 : i32, i32
  }
  func.func @transform_4(%arg0: i32) -> (i32, i32) {
    %c0_i32 = arith.constant 0 : i32
    %c0_i32_0 = arith.constant 0 : i32
    %c0_i32_1 = arith.constant 0 : i32
    return %c0_i32, %c0_i32_0 : i32, i32
  }
  func.func @transform_5(%arg0: i32) -> (i32, i32) {
    %c0_i32 = arith.constant 0 : i32
    %c0_i32_0 = arith.constant 0 : i32
    return %arg0, %c0_i32 : i32, i32
  }
}

</mosaic_0001>

<llo_original>
// kernel: mlp_forward.3
$region0: #{mlp_forward.3}
  #allocation0 [shape = 'u32[]', space=smem, size = 0x4, offset = 0x4, fixed_abs, tag = 'smem constant byte address 0x4 - core index']
  #allocation1 [shape = 'u32[72,128]{1,0:T(1,128)}', space=vmem, size = 0x9000, scoped, tag = 'internal scratch']
  %s0 = inlined_call_operand.vmem [shape: bf16[16,128], index: 0, kind: input, shape index: {}]
  %s1 = inlined_call_operand.vmem [shape: f32[1,128], index: 1, kind: input, shape index: {}]
  %s2 = inlined_call_operand.vmem [shape: f32[1,128], index: 2, kind: input, shape index: {}]
  %s3 = inlined_call_operand.vmem [shape: bf16[128,128], index: 3, kind: input, shape index: {}]
  %s4 = inlined_call_operand.vmem [shape: f32[1,128], index: 4, kind: input, shape index: {}]
  %s5 = inlined_call_operand.vmem [shape: f32[16,128], index: 5, kind: output, shape index: {}]
  %s6 = sld [smem:[#allocation0]]
  $region30: #{mlp_forward.3} parent=0
    _
  %s8 = ssub.s32 1, %s6
  %s9 = scalar_select 0, %s8, %s6
  // Predicated region
  $region2: #{mlp_forward.3} parent=0 // pred_check
    _
  $region3: #{mlp_forward.3} parent=0 // pred_check_branch
    %11 = sbr.rel (0) target = $region5
  $region4: #{mlp_forward.3} parent=0 // pred_region
    _
  $region5: #{mlp_forward.3} parent=0 // pred_fallthru
    _
  // Predicated region
  $region6: #{mlp_forward.3} parent=0 // pred_check
    _
  $region7: #{mlp_forward.3} parent=0 // pred_check_branch
    %13 = sbr.rel (0) target = $region9
  $region8: #{mlp_forward.3} parent=0 // pred_region
    _
  $region9: #{mlp_forward.3} parent=0 // pred_fallthru
    _
  // Predicated region
  $region10: #{mlp_forward.3} parent=0 // pred_check
    _
  $region11: #{mlp_forward.3} parent=0 // pred_check_branch
    %15 = sbr.rel (0) target = $region13
  $region12: #{mlp_forward.3} parent=0 // pred_region
    _
  $region13: #{mlp_forward.3} parent=0 // pred_fallthru
    _
  // Predicated region
  $region14: #{mlp_forward.3} parent=0 // pred_check
    _
  $region15: #{mlp_forward.3} parent=0 // pred_check_branch
    %17 = sbr.rel (0) target = $region17
  $region16: #{mlp_forward.3} parent=0 // pred_region
    _
  $region17: #{mlp_forward.3} parent=0 // pred_fallthru
    _
  // Predicated region
  $region18: #{mlp_forward.3} parent=0 // pred_check
    _
  $region19: #{mlp_forward.3} parent=0 // pred_check_branch
    %19 = sbr.rel (0) target = $region21
  $region20: #{mlp_forward.3} parent=0 // pred_region
    _
  $region21: #{mlp_forward.3} parent=0 // pred_fallthru
    _
  %v20 = vld [vmem:[%s0] sm:$0xf]
  %v21 = vld [vmem:[%s0 + $0x4] sm:$0xf]
  %v22 = vunpack.c.l.bf16 %v20
  %v23 = vunpack.c.l.bf16 %v21
  %v24 = vld [vmem:[%s1] sm:$0x1]
  %v26 = vperm.slane %v24, 0
  %v28 = vmul.f32 %v22, %v26
  %v29 = vmul.f32 %v23, %v26
  %v30 = vld [vmem:[%s2] sm:$0x1]
  %v32 = vperm.slane %v30, 0
  %v34 = vadd.f32 %v28, %v32
  %v35 = vadd.f32 %v29, %v32
  %v36 = vmax.f32 %v34, 0.0
  %v37 = vmax.f32 %v35, 0.0
  %v38 = vpack.c.bf16 %v37, %v36
  %v39 = vld [vmem:[%s3] sm:$0xf]
  %v40 = vld [vmem:[%s3 + $0x4] sm:$0xf]
  %v41 = vld [vmem:[%s3 + $0x8] sm:$0xf]
  %v42 = vld [vmem:[%s3 + $0xc] sm:$0xf]
  %v43 = vld [vmem:[%s3 + $0x10] sm:$0xf]
  %v44 = vld [vmem:[%s3 + $0x14] sm:$0xf]
  %v45 = vld [vmem:[%s3 + $0x18] sm:$0xf]
  %v46 = vld [vmem:[%s3 + $0x1c] sm:$0xf]
  %v47 = vld [vmem:[%s3 + $0x20] sm:$0xf]
  %v48 = vld [vmem:[%s3 + $0x24] sm:$0xf]
  %v49 = vld [vmem:[%s3 + $0x28] sm:$0xf]
  %v50 = vld [vmem:[%s3 + $0x2c] sm:$0xf]
  %v51 = vld [vmem:[%s3 + $0x30] sm:$0xf]
  %v52 = vld [vmem:[%s3 + $0x34] sm:$0xf]
  %v53 = vld [vmem:[%s3 + $0x38] sm:$0xf]
  %v54 = vld [vmem:[%s3 + $0x3c] sm:$0xf]
  %v55 = vld [vmem:[%s4] sm:$0x1]
  %v57 = vperm.slane %v55, 0
  %v75 = vunpack.c.l.b16 %v39
  %v76 = vunpack.c.l.b16 %v40
  %v77 = vunpack.c.l.b16 %v41
  %v78 = vunpack.c.l.b16 %v42
  %v79 = vunpack.c.l.b16 %v43
  %v80 = vunpack.c.l.b16 %v44
  %v81 = vunpack.c.l.b16 %v45
  %v82 = vunpack.c.l.b16 %v46
  %v83 = vunpack.c.l.b16 %v47
  %v84 = vunpack.c.l.b16 %v48
  %v85 = vunpack.c.l.b16 %v49
  %v86 = vunpack.c.l.b16 %v50
  %v87 = vunpack.c.l.b16 %v51
  %v88 = vunpack.c.l.b16 %v52
  %v89 = vunpack.c.l.b16 %v53
  %v90 = vunpack.c.l.b16 %v54
  %v91 = vpack.c.b16 %v76, %v75
  %v92 = vpack.c.b16 %v78, %v77
  %v93 = vpack.c.b16 %v80, %v79
  %v94 = vpack.c.b16 %v82, %v81
  %v95 = vpack.c.b16 %v84, %v83
  %v96 = vpack.c.b16 %v86, %v85
  %v97 = vpack.c.b16 %v88, %v87
  %v98 = vpack.c.b16 %v90, %v89
  %107 = vmatpush.bf16.msra.mxu0 %v98
  %108 = vmatpush.bf16.msra.mxu0 %v97
  %109 = vmatpush.bf16.msra.mxu0 %v96
  %110 = vmatpush.bf16.msra.mxu0 %v95
  %111 = vmatpush.bf16.msra.mxu0 %v94
  %112 = vmatpush.bf16.msra.mxu0 %v93
  %113 = vmatpush.bf16.msra.mxu0 %v92
  %114 = vmatpush.bf16.msra.mxu0 %v91
  %115 = vmatmul.bf16.gmra.mxu0 %v38
  %v116 = vpop.f32.mrf.mxu0
  %v117 = vadd.f32 %v57, %v116
  %v118 = vpop.f32.mrf.mxu0
  %v119 = vadd.f32 %v57, %v118
  %120 = vdwg.mxu0
  %121 = vst [vmem:[%s5] sm:$0xff] %v117
  %122 = vst [vmem:[%s5 + $0x8] sm:$0xff] %v119
  // Predicated region
  $region22: #{mlp_forward.3} parent=0 // pred_check
    _
  $region23: #{mlp_forward.3} parent=0 // pred_check_branch
    %124 = sbr.rel (0) target = $region25
  $region24: #{mlp_forward.3} parent=0 // pred_region
    _
  $region25: #{mlp_forward.3} parent=0 // pred_fallthru
    _
  // Predicated region
  $region26: #{mlp_forward.3} parent=0 // pred_check
    _
  $region27: #{mlp_forward.3} parent=0 // pred_check_branch
    %126 = sbr.rel (0) target = $region29
  $region28: #{mlp_forward.3} parent=0 // pred_region
    _
  $region29: #{mlp_forward.3} parent=0 // pred_fallthru
    _

// kernel: mlp_forward.2
$region0: #{mlp_forward.2}
  #allocation0 [shape = 'u32[]', space=smem, size = 0x4, offset = 0x4, fixed_abs, tag = 'smem constant byte address 0x4 - core index']
  #allocation1 [shape = 'u32[72,128]{1,0:T(1,128)}', space=vmem, size = 0x9000, scoped, tag = 'internal scratch']
  #allocation2 [shape = 'f32[16,128]{1,0:T(8,128)}', space=vmem, size = 0x2000, scoped, tag = 'scratch operand']
  %s0 = inlined_call_operand.vmem [shape: bf16[16,1024], index: 0, kind: input, shape index: {}]
  %s1 = inlined_call_operand.hbm [shape: bf16[1024,128], index: 1, kind: input, shape index: {}]
  %s2 = inlined_call_operand.vmem [shape: bf16[16,128], index: 2, kind: output, shape index: {0}]
  %s3 = inlined_call_operand.vmem [shape: f32[1,8,128], index: 3, kind: output, shape index: {1}]
  %4 = xla_tuple %s2, %s3
  %s5 = sld [smem:[#allocation0]]
  $region84: #{mlp_forward.2} parent=0
    _
  %s7 = ssub.s32 1, %s5
  %s8 = scalar_select 0, %s7, %s5
  $region1: #{mlp_forward.2} parent=0
    #allocation3 [shape = 'u8[32768]{0}', space=vmem, size = 0x8000, scoped, tag = 'input window, operand 0']
    #allocation4 [shape = 'u8[262144]{0}', space=vmem, size = 0x40000, scoped, tag = 'input window, operand 1']
    #allocation5 [shape = 's32[2]{0}', space=sflag, size = 0x8, scoped, tag = 'scoped memory for mlp_forward.2']
    %9 = vsyncpa [#allocation5], 0
    %s10 = scalar_lea.sflag [#allocation5], 1
    %11 = vsyncpa %s10, 0
    loop: start=0, step=1, limit=4
    $region2: #{mlp_forward.2} parent=1 // loop_pre_header
      _
    $region3: #{mlp_forward.2} parent=1 // loop_header
      %s13 = sphi 0, %s17
      %p14 = scmp.ge.s32.totalorder %s13, 4
      %s20 = sphi 0, %s32
      %s21 = sphi 0, %s28
      %s22 = sphi 0, %s20
      %s23 = sphi 0, %s21
      %s24 = sphi 0, %s22
      %s25 = sphi 0, %s23
      %s37 = sphi 0, %s39
      %s40 = sphi 0, %s37
      %s41 = sphi 0, %s40
      %s57 = sphi 0, %s41
      %s63 = sphi 0, %s65
      %s66 = sphi 0, %s63
      %s67 = sphi 0, %s66
      %s83 = sphi 0, %s67
      %s89 = sphi 0, %s91
      %s92 = sphi 0, %s89
      %s93 = sphi 0, %s92
      %s109 = sphi 0, %s93
      %s115 = sphi 0, %s117
      %s118 = sphi 0, %s115
      %s119 = sphi 0, %s118
      %s135 = sphi 0, %s119
    $region4: #{mlp_forward.2} parent=1 // loop_header_branch
      %16 = sbr.rel (%p14) target = $region8
    $region5: #{mlp_forward.2} parent=1 // loop_body
      %s18 = ssub.s32 %s13, 1
      %s19 = ssub.s32 %s13, 2
      %s26 = sadd.s32 1, %s21
      %p27 = scmp.ge.s32.totalorder %s26, 2
      %s28 = scalar_select %p27, 0, %s26
      %s29 = sadd.s32 1, %s20
      %s30 = scalar_select %p27, %s29, %s20
      %p31 = scmp.ge.s32.totalorder %s30, 1
      %s32 = scalar_select %p31, 0, %s30
      %s33 = ssub.s32 %s20, %s32
      %s34 = ssub.s32 %s21, %s28
      %s35 = sor.u32 %s33, %s34
      %p36 = scmp.eq.s32.totalorder %s35, 0
      %s38 = sadd.s32 %s37, 1
      %s39 = scalar_select %p36, %s37, %s38
      %p42 = pneg %p36
      %p43 = scmp.eq.s32.totalorder %s13, 1
      %p44 = por %p42, %p43
      %p45 = scmp.ne.s32.totalorder %s37, %s40
      %p46 = scmp.eq.s32.totalorder %s13, 0
      %p47 = por %p45, %p46
      %p48 = scmp.ne.s32.totalorder %s37, %s40
      %p49 = scmp.eq.s32.totalorder %s18, 1
      %p50 = por %p48, %p49
      %p51 = scmp.ne.s32.totalorder %s40, %s41
      %p52 = scmp.eq.s32.totalorder %s18, 0
      %p53 = por %p51, %p52
      %p54 = scmp.ne.s32.totalorder %s40, %s41
      %p55 = scmp.eq.s32.totalorder %s19, 1
      %p56 = por %p54, %p55
      %p58 = scmp.ne.s32.totalorder %s41, %s57
      %p59 = scmp.eq.s32.totalorder %s19, 0
      %p60 = por %p58, %p59
      %s61 = ssub.s32 %s21, %s28
      %p62 = scmp.eq.s32.totalorder %s61, 0
      %s64 = sadd.s32 %s63, 1
      %s65 = scalar_select %p62, %s63, %s64
      %p68 = pneg %p62
      %p69 = scmp.eq.s32.totalorder %s13, 1
      %p70 = por %p68, %p69
      %p71 = scmp.ne.s32.totalorder %s63, %s66
      %p72 = scmp.eq.s32.totalorder %s13, 0
      %p73 = por %p71, %p72
      %p74 = scmp.ne.s32.totalorder %s63, %s66
      %p75 = scmp.eq.s32.totalorder %s18, 1
      %p76 = por %p74, %p75
      %p77 = scmp.ne.s32.totalorder %s66, %s67
      %p78 = scmp.eq.s32.totalorder %s18, 0
      %p79 = por %p77, %p78
      %p80 = scmp.ne.s32.totalorder %s66, %s67
      %p81 = scmp.eq.s32.totalorder %s19, 1
      %p82 = por %p80, %p81
      %p84 = scmp.ne.s32.totalorder %s67, %s83
      %p85 = scmp.eq.s32.totalorder %s19, 0
      %p86 = por %p84, %p85
      %s87 = ssub.s32 %s20, %s32
      %p88 = scmp.eq.s32.totalorder %s87, 0
      %s90 = sadd.s32 %s89, 1
      %s91 = scalar_select %p88, %s89, %s90
      %p94 = pneg %p88
      %p95 = scmp.eq.s32.totalorder %s13, 1
      %p96 = por %p94, %p95
      %p97 = scmp.ne.s32.totalorder %s89, %s92
      %p98 = scmp.eq.s32.totalorder %s13, 0
      %p99 = por %p97, %p98
      %p100 = scmp.ne.s32.totalorder %s89, %s92
      %p101 = scmp.eq.s32.totalorder %s18, 1
      %p102 = por %p100, %p101
      %p103 = scmp.ne.s32.totalorder %s92, %s93
      %p104 = scmp.eq.s32.totalorder %s18, 0
      %p105 = por %p103, %p104
      %p106 = scmp.ne.s32.totalorder %s92, %s93
      %p107 = scmp.eq.s32.totalorder %s19, 1
      %p108 = por %p106, %p107
      %p110 = scmp.ne.s32.totalorder %s93, %s109
      %p111 = scmp.eq.s32.totalorder %s19, 0
      %p112 = por %p110, %p111
      %s113 = ssub.s32 %s20, %s32
      %p114 = scmp.eq.s32.totalorder %s113, 0
      %s116 = sadd.s32 %s115, 1
      %s117 = scalar_select %p114, %s115, %s116
      %p120 = pneg %p114
      %p121 = scmp.eq.s32.totalorder %s13, 1
      %p122 = por %p120, %p121
      %p123 = scmp.ne.s32.totalorder %s115, %s118
      %p124 = scmp.eq.s32.totalorder %s13, 0
      %p125 = por %p123, %p124
      %p126 = scmp.ne.s32.totalorder %s115, %s118
      %p127 = scmp.eq.s32.totalorder %s18, 1
      %p128 = por %p126, %p127
      %p129 = scmp.ne.s32.totalorder %s118, %s119
      %p130 = scmp.eq.s32.totalorder %s18, 0
      %p131 = por %p129, %p130
      %p132 = scmp.ne.s32.totalorder %s118, %s119
      %p133 = scmp.eq.s32.totalorder %s19, 1
      %p134 = por %p132, %p133
      %p136 = scmp.ne.s32.totalorder %s119, %s135
      %p137 = scmp.eq.s32.totalorder %s19, 0
      %p138 = por %p136, %p137
      %p139 = scmp.le.s32.totalorder 1, %s13
      %p140 = scmp.lt.s32.totalorder %s13, 3
      %p141 = pnand %p139, %p140
      %p142 = pneg %p141
      // Predicated region
      $region9: #{mlp_forward.2} parent=5 // pred_check
        _
      $region10: #{mlp_forward.2} parent=5 // pred_check_branch
        %144 = sbr.rel (%p141) target = $region12
      $region11: #{mlp_forward.2} parent=5 // pred_region
        %s145 = ssub.s32 %s13, 1
      $region12: #{mlp_forward.2} parent=5 // pred_fallthru
        _
      %p146 = scmp.lt.s32.totalorder %s13, 2
      // Predicated region
      $region13: #{mlp_forward.2} parent=5 // pred_check
        %p147 = pneg %p146
      $region14: #{mlp_forward.2} parent=5 // pred_check_branch
        %149 = sbr.rel (%p147) target = $region16
      $region15: #{mlp_forward.2} parent=5 // pred_region
        // Predicated region
        $region17: #{mlp_forward.2} parent=15 // pred_check
          %p150 = pneg %p47
        $region18: #{mlp_forward.2} parent=15 // pred_check_branch
          %152 = sbr.rel (%p150) target = $region20
        $region19: #{mlp_forward.2} parent=15 // pred_region
          %s153 = sand.u32 %s37, 1
          %s154 = sand.u32 %s37, 1
          %s155 = smul.addr %s154, 32
          %s156 = scalar_lea.vmem [#allocation3], %s155
          %s157 = smul.u32 2, %s20
          %s158 = smul.u32 4, %s21
          %s159 = smul.addr %s157, 8
          %s160 = sadd.s32 %s158, %s159
          %s161 = smul.addr %s160, 4
          %s162 = scalar_lea.vmem %s0, %s161
          // Predicated region
          $region21: #{mlp_forward.2} parent=19 // pred_check
            _
          $region22: #{mlp_forward.2} parent=19 // pred_check_branch
            %164 = sbr.rel (0) target = $region24
          $region23: #{mlp_forward.2} parent=19 // pred_region
            // Predicated region
            $region25: #{mlp_forward.2} parent=23 // pred_check
              _
            $region26: #{mlp_forward.2} parent=23 // pred_check_branch
              %166 = sbr.rel (0) target = $region28
            $region27: #{mlp_forward.2} parent=23 // pred_region
              loop: start=0, step=1, limit=1
              $region29: #{mlp_forward.2} parent=27 // loop_pre_header
                _
              $region30: #{mlp_forward.2} parent=27 // loop_header
                %s168 = sphi 0, %s172
                %p169 = scmp.ge.s32.totalorder %s168, 1
                %s173 = sphi %s162, %s162
                %s174 = sphi %s156, %s156
              $region31: #{mlp_forward.2} parent=27 // loop_header_branch
                %171 = sbr.rel (%p169) target = $region35
              $region32: #{mlp_forward.2} parent=27 // loop_body
                %v175 = vld [vmem:[%s173] sm:$0xff]
                %176 = vst [vmem:[%s174] sm:$0xff] %v175
                %v177 = vld [vmem:[%s173 + $0x8] sm:$0xff]
                %178 = vst [vmem:[%s174 + $0x8] sm:$0xff] %v177
                %v179 = vld [vmem:[%s173 + $0x20] sm:$0xff]
                %180 = vst [vmem:[%s174 + $0x10] sm:$0xff] %v179
                %v181 = vld [vmem:[%s173 + $0x28] sm:$0xff]
                %182 = vst [vmem:[%s174 + $0x18] sm:$0xff] %v181
              $region33: #{mlp_forward.2} parent=27 // loop_footer
                %s172 = sadd.s32 1, %s168
              $region34: #{mlp_forward.2} parent=27 // loop_footer_branch
                %167 = sbr.rel target = $region30
              $region35: #{mlp_forward.2} parent=27 // loop_exit
                _
            $region28: #{mlp_forward.2} parent=23 // pred_fallthru
              _
            // Predicated region
            $region36: #{mlp_forward.2} parent=23 // pred_check
              _
            $region37: #{mlp_forward.2} parent=23 // pred_check_branch
              %184 = sbr.rel target = $region39
            $region38: #{mlp_forward.2} parent=23 // pred_region
              _
            $region39: #{mlp_forward.2} parent=23 // pred_fallthru
              _
          $region24: #{mlp_forward.2} parent=19 // pred_fallthru
            _
          %185 = vnop
        $region20: #{mlp_forward.2} parent=15 // pred_fallthru
          _
        // Predicated region
        $region40: #{mlp_forward.2} parent=15 // pred_check
          %p186 = pneg %p73
        $region41: #{mlp_forward.2} parent=15 // pred_check_branch
          %188 = sbr.rel (%p186) target = $region43
        $region42: #{mlp_forward.2} parent=15 // pred_region
          %s189 = sand.u32 %s63, 1
          %s190 = scalar_lea.sflag [#allocation5], %s189
          %s191 = sand.u32 %s63, 1
          %s192 = smul.addr %s191, 256
          %s193 = scalar_lea.vmem [#allocation4], %s192
          %s194 = smul.u32 64, %s21
          %196 = vsyncadd %s190, 0
          %s197 = smul.addr %s194, 4
          %s198 = scalar_lea.hbm %s1, %s197
          %s199 = sshll.u32 %s198, 4
          %s200 = int_to_ptr.hbm [resolvable:$true] %s199
          %s201 = sshll.u32 %s193, 4
          %s202 = int_to_ptr.vmem [resolvable:$true] %s201
          %207 = dma.hbm_to_vmem [thread:$0]  %s200, 4096, %s202, %s190, 64, 64, 4
        $region43: #{mlp_forward.2} parent=15 // pred_fallthru
          _
      $region16: #{mlp_forward.2} parent=5 // pred_fallthru
        _
      %p208 = scmp.le.s32.totalorder 1, %s13
      %p209 = scmp.lt.s32.totalorder %s13, 3
      %p210 = pnand %p208, %p209
      %p211 = pneg %p210
      // Predicated region
      $region44: #{mlp_forward.2} parent=5 // pred_check
        _
      $region45: #{mlp_forward.2} parent=5 // pred_check_branch
        %213 = sbr.rel (%p210) target = $region47
      $region46: #{mlp_forward.2} parent=5 // pred_region
        %s214 = ssub.s32 %s13, 1
        %s215 = sand.u32 %s40, 1
        %s216 = sand.u32 %s40, 1
        %s217 = smul.addr %s216, 32
        %s218 = scalar_lea.vmem [#allocation3], %s217
        // Predicated region
        $region48: #{mlp_forward.2} parent=46 // pred_check
          %p219 = pneg %p53
        $region49: #{mlp_forward.2} parent=46 // pred_check_branch
          %221 = sbr.rel (%p219) target = $region51
        $region50: #{mlp_forward.2} parent=46 // pred_region
          _
        $region51: #{mlp_forward.2} parent=46 // pred_fallthru
          _
        %s222 = sand.u32 %s66, 1
        %s223 = scalar_lea.sflag [#allocation5], %s222
        %s224 = sand.u32 %s66, 1
        %s225 = smul.addr %s224, 256
        %s226 = scalar_lea.vmem [#allocation4], %s225
        // Predicated region
        $region52: #{mlp_forward.2} parent=46 // pred_check
          %p227 = pneg %p79
        $region53: #{mlp_forward.2} parent=46 // pred_check_branch
          %229 = sbr.rel (%p227) target = $region55
        $region54: #{mlp_forward.2} parent=46 // pred_region
          %231 = dma.done %s223, 4096
        $region55: #{mlp_forward.2} parent=46 // pred_fallthru
          _
        %s232 = sand.u32 %s40, 1
        %s233 = sand.u32 %s40, 1
        %s234 = smul.addr %s233, 32
        %s235 = scalar_lea.vmem [#allocation3], %s234
        %p236 = pneg %p53
        %p237 = pneg %p50
        %s238 = sand.u32 %s66, 1
        %s239 = scalar_lea.sflag [#allocation5], %s238
        %s240 = sand.u32 %s66, 1
        %s241 = smul.addr %s240, 256
        %s242 = scalar_lea.vmem [#allocation4], %s241
        %p243 = pneg %p79
        %p244 = pneg %p76
        %p245 = pneg %p105
        %p246 = pneg %p102
        %s247 = smul.u32 2, %s22
        %p248 = scmp.lt.s32.totalorder %s247, 1
        %s249 = scalar_select %p248, %s247, 1
        %s250 = smul.addr %s249, 4
        %s251 = scalar_lea.vmem %s2, %s250
        %p252 = pneg %p131
        %p253 = pneg %p128
        %p254 = scmp.lt.s32.totalorder %s22, 0
        %s255 = scalar_select %p254, %s22, 0
        %s256 = smul.addr %s255, 8
        %s257 = scalar_lea.vmem %s3, %s256
        %s258 = smul.u32 2, %s22
        %s259 = smul.u32 4, %s23
        %s260 = smul.u32 64, %s23
        %s261 = smul.u32 2, %s22
        %p262 = scmp.lt.s32.totalorder %s261, 1
        %s263 = scalar_select %p262, %s261, 1
        %s264 = smul.addr %s263, 4
        %s265 = scalar_lea.vmem %s2, %s264
        %s266 = smul.u32 2, %s22
        %p267 = scmp.lt.s32.totalorder %s22, 0
        %s268 = scalar_select %p267, %s22, 0
        %s269 = smul.addr %s268, 8
        %s270 = scalar_lea.vmem %s3, %s269
        %p271 = scmp.eq.s32.totalorder %s23, 0
        // Predicated region
        $region56: #{mlp_forward.2} parent=46 // pred_check
          %p272 = pneg %p271
        $region57: #{mlp_forward.2} parent=46 // pred_check_branch
          %274 = sbr.rel (%p272) target = $region59
        $region58: #{mlp_forward.2} parent=46 // pred_region
          %275 = vst [vmem:[#allocation2] sm:$0xff] 0.0
          %276 = vst [vmem:[#allocation2 + $0x8] sm:$0xff] 0.0
          %277 = vst [vmem:[%s270] sm:$0xff] 0.0
        $region59: #{mlp_forward.2} parent=46 // pred_fallthru
          _
        %v278 = vld [vmem:[#allocation2] sm:$0xff]
        %v279 = vld [vmem:[#allocation2 + $0x8] sm:$0xff]
        %v280 = vld [vmem:[%s218] sm:$0xff]
        %v281 = vld [vmem:[%s218 + $0x8] sm:$0xff]
        %v282 = vld [vmem:[%s218 + $0x10] sm:$0xff]
        %v283 = vld [vmem:[%s218 + $0x18] sm:$0xff]
        %v284 = vld [vmem:[%s226] sm:$0xf]
        %v285 = vld [vmem:[%s226 + $0x4] sm:$0xf]
        %v286 = vld [vmem:[%s226 + $0x8] sm:$0xf]
        %v287 = vld [vmem:[%s226 + $0xc] sm:$0xf]
        %v288 = vld [vmem:[%s226 + $0x10] sm:$0xf]
        %v289 = vld [vmem:[%s226 + $0x14] sm:$0xf]
        %v290 = vld [vmem:[%s226 + $0x18] sm:$0xf]
        %v291 = vld [vmem:[%s226 + $0x1c] sm:$0xf]
        %v292 = vld [vmem:[%s226 + $0x20] sm:$0xf]
        %v293 = vld [vmem:[%s226 + $0x24] sm:$0xf]
        %v294 = vld [vmem:[%s226 + $0x28] sm:$0xf]
        %v295 = vld [vmem:[%s226 + $0x2c] sm:$0xf]
        %v296 = vld [vmem:[%s226 + $0x30] sm:$0xf]
        %v297 = vld [vmem:[%s226 + $0x34] sm:$0xf]
        %v298 = vld [vmem:[%s226 + $0x38] sm:$0xf]
        %v299 = vld [vmem:[%s226 + $0x3c] sm:$0xf]
        %v300 = vld [vmem:[%s226 + $0x40] sm:$0xf]
        %v301 = vld [vmem:[%s226 + $0x44] sm:$0xf]
        %v302 = vld [vmem:[%s226 + $0x48] sm:$0xf]
        %v303 = vld [vmem:[%s226 + $0x4c] sm:$0xf]
        %v304 = vld [vmem:[%s226 + $0x50] sm:$0xf]
        %v305 = vld [vmem:[%s226 + $0x54] sm:$0xf]
        %v306 = vld [vmem:[%s226 + $0x58] sm:$0xf]
        %v307 = vld [vmem:[%s226 + $0x5c] sm:$0xf]
        %v308 = vld [vmem:[%s226 + $0x60] sm:$0xf]
        %v309 = vld [vmem:[%s226 + $0x64] sm:$0xf]
        %v310 = vld [vmem:[%s226 + $0x68] sm:$0xf]
        %v311 = vld [vmem:[%s226 + $0x6c] sm:$0xf]
        %v312 = vld [vmem:[%s226 + $0x70] sm:$0xf]
        %v313 = vld [vmem:[%s226 + $0x74] sm:$0xf]
        %v314 = vld [vmem:[%s226 + $0x78] sm:$0xf]
        %v315 = vld [vmem:[%s226 + $0x7c] sm:$0xf]
        %v316 = vld [vmem:[%s226 + $0x80] sm:$0xf]
        %v317 = vld [vmem:[%s226 + $0x84] sm:$0xf]
        %v318 = vld [vmem:[%s226 + $0x88] sm:$0xf]
        %v319 = vld [vmem:[%s226 + $0x8c] sm:$0xf]
        %v320 = vld [vmem:[%s226 + $0x90] sm:$0xf]
        %v321 = vld [vmem:[%s226 + $0x94] sm:$0xf]
        %v322 = vld [vmem:[%s226 + $0x98] sm:$0xf]
        %v323 = vld [vmem:[%s226 + $0x9c] sm:$0xf]
        %v324 = vld [vmem:[%s226 + $0xa0] sm:$0xf]
        %v325 = vld [vmem:[%s226 + $0xa4] sm:$0xf]
        %v326 = vld [vmem:[%s226 + $0xa8] sm:$0xf]
        %v327 = vld [vmem:[%s226 + $0xac] sm:$0xf]
        %v328 = vld [vmem:[%s226 + $0xb0] sm:$0xf]
        %v329 = vld [vmem:[%s226 + $0xb4] sm:$0xf]
        %v330 = vld [vmem:[%s226 + $0xb8] sm:$0xf]
        %v331 = vld [vmem:[%s226 + $0xbc] sm:$0xf]
        %v332 = vld [vmem:[%s226 + $0xc0] sm:$0xf]
        %v333 = vld [vmem:[%s226 + $0xc4] sm:$0xf]
        %v334 = vld [vmem:[%s226 + $0xc8] sm:$0xf]
        %v335 = vld [vmem:[%s226 + $0xcc] sm:$0xf]
        %v336 = vld [vmem:[%s226 + $0xd0] sm:$0xf]
        %v337 = vld [vmem:[%s226 + $0xd4] sm:$0xf]
        %v338 = vld [vmem:[%s226 + $0xd8] sm:$0xf]
        %v339 = vld [vmem:[%s226 + $0xdc] sm:$0xf]
        %v340 = vld [vmem:[%s226 + $0xe0] sm:$0xf]
        %v341 = vld [vmem:[%s226 + $0xe4] sm:$0xf]
        %v342 = vld [vmem:[%s226 + $0xe8] sm:$0xf]
        %v343 = vld [vmem:[%s226 + $0xec] sm:$0xf]
        %v344 = vld [vmem:[%s226 + $0xf0] sm:$0xf]
        %v345 = vld [vmem:[%s226 + $0xf4] sm:$0xf]
        %v346 = vld [vmem:[%s226 + $0xf8] sm:$0xf]
        %v347 = vld [vmem:[%s226 + $0xfc] sm:$0xf]
        %v352 = vunpack.c.l.b16 %v280
        %v353 = vunpack.c.h.b16 %v280
        %v354 = vunpack.c.l.b16 %v281
        %v355 = vunpack.c.h.b16 %v281
        %v356 = vunpack.c.l.b16 %v282
        %v357 = vunpack.c.h.b16 %v282
        %v358 = vunpack.c.l.b16 %v283
        %v359 = vunpack.c.h.b16 %v283
        %v360 = vpack.c.b16 %v356, %v352
        %v361 = vpack.c.b16 %v357, %v353
        %v362 = vpack.c.b16 %v358, %v354
        %v363 = vpack.c.b16 %v359, %v355
        %v432 = vunpack.c.l.b16 %v284
        %v433 = vunpack.c.l.b16 %v285
        %v434 = vunpack.c.l.b16 %v286
        %v435 = vunpack.c.l.b16 %v287
        %v436 = vunpack.c.l.b16 %v288
        %v437 = vunpack.c.l.b16 %v289
        %v438 = vunpack.c.l.b16 %v290
        %v439 = vunpack.c.l.b16 %v291
        %v440 = vunpack.c.l.b16 %v292
        %v441 = vunpack.c.l.b16 %v293
        %v442 = vunpack.c.l.b16 %v294
        %v443 = vunpack.c.l.b16 %v295
        %v444 = vunpack.c.l.b16 %v296
        %v445 = vunpack.c.l.b16 %v297
        %v446 = vunpack.c.l.b16 %v298
        %v447 = vunpack.c.l.b16 %v299
        %v448 = vunpack.c.l.b16 %v300
        %v449 = vunpack.c.l.b16 %v301
        %v450 = vunpack.c.l.b16 %v302
        %v451 = vunpack.c.l.b16 %v303
        %v452 = vunpack.c.l.b16 %v304
        %v453 = vunpack.c.l.b16 %v305
        %v454 = vunpack.c.l.b16 %v306
        %v455 = vunpack.c.l.b16 %v307
        %v456 = vunpack.c.l.b16 %v308
        %v457 = vunpack.c.l.b16 %v309
        %v458 = vunpack.c.l.b16 %v310
        %v459 = vunpack.c.l.b16 %v311
        %v460 = vunpack.c.l.b16 %v312
        %v461 = vunpack.c.l.b16 %v313
        %v462 = vunpack.c.l.b16 %v314
        %v463 = vunpack.c.l.b16 %v315
        %v464 = vunpack.c.l.b16 %v316
        %v465 = vunpack.c.l.b16 %v317
        %v466 = vunpack.c.l.b16 %v318
        %v467 = vunpack.c.l.b16 %v319
        %v468 = vunpack.c.l.b16 %v320
        %v469 = vunpack.c.l.b16 %v321
        %v470 = vunpack.c.l.b16 %v322
        %v471 = vunpack.c.l.b16 %v323
        %v472 = vunpack.c.l.b16 %v324
        %v473 = vunpack.c.l.b16 %v325
        %v474 = vunpack.c.l.b16 %v326
        %v475 = vunpack.c.l.b16 %v327
        %v476 = vunpack.c.l.b16 %v328
        %v477 = vunpack.c.l.b16 %v329
        %v478 = vunpack.c.l.b16 %v330
        %v479 = vunpack.c.l.b16 %v331
        %v480 = vunpack.c.l.b16 %v332
        %v481 = vunpack.c.l.b16 %v333
        %v482 = vunpack.c.l.b16 %v334
        %v483 = vunpack.c.l.b16 %v335
        %v484 = vunpack.c.l.b16 %v336
        %v485 = vunpack.c.l.b16 %v337
        %v486 = vunpack.c.l.b16 %v338
        %v487 = vunpack.c.l.b16 %v339
        %v488 = vunpack.c.l.b16 %v340
        %v489 = vunpack.c.l.b16 %v341
        %v490 = vunpack.c.l.b16 %v342
        %v491 = vunpack.c.l.b16 %v343
        %v492 = vunpack.c.l.b16 %v344
        %v493 = vunpack.c.l.b16 %v345
        %v494 = vunpack.c.l.b16 %v346
        %v495 = vunpack.c.l.b16 %v347
        %v496 = vpack.c.b16 %v433, %v432
        %v497 = vpack.c.b16 %v435, %v434
        %v498 = vpack.c.b16 %v437, %v436
        %v499 = vpack.c.b16 %v439, %v438
        %v500 = vpack.c.b16 %v441, %v440
        %v501 = vpack.c.b16 %v443, %v442
        %v502 = vpack.c.b16 %v445, %v444
        %v503 = vpack.c.b16 %v447, %v446
        %v504 = vpack.c.b16 %v449, %v448
        %v505 = vpack.c.b16 %v451, %v450
        %v506 = vpack.c.b16 %v453, %v452
        %v507 = vpack.c.b16 %v455, %v454
        %v508 = vpack.c.b16 %v457, %v456
        %v509 = vpack.c.b16 %v459, %v458
        %v510 = vpack.c.b16 %v461, %v460
        %v511 = vpack.c.b16 %v463, %v462
        %v512 = vpack.c.b16 %v465, %v464
        %v513 = vpack.c.b16 %v467, %v466
        %v514 = vpack.c.b16 %v469, %v468
        %v515 = vpack.c.b16 %v471, %v470
        %v516 = vpack.c.b16 %v473, %v472
        %v517 = vpack.c.b16 %v475, %v474
        %v518 = vpack.c.b16 %v477, %v476
        %v519 = vpack.c.b16 %v479, %v478
        %v520 = vpack.c.b16 %v481, %v480
        %v521 = vpack.c.b16 %v483, %v482
        %v522 = vpack.c.b16 %v485, %v484
        %v523 = vpack.c.b16 %v487, %v486
        %v524 = vpack.c.b16 %v489, %v488
        %v525 = vpack.c.b16 %v491, %v490
        %v526 = vpack.c.b16 %v493, %v492
        %v527 = vpack.c.b16 %v495, %v494
        %560 = vmatpush.bf16.msra.mxu0 %v503
        %561 = vmatpush.bf16.msra.mxu0 %v502
        %562 = vmatpush.bf16.msra.mxu0 %v501
        %563 = vmatpush.bf16.msra.mxu0 %v500
        %564 = vmatpush.bf16.msra.mxu0 %v499
        %565 = vmatpush.bf16.msra.mxu0 %v498
        %566 = vmatpush.bf16.msra.mxu0 %v497
        %567 = vmatpush.bf16.msra.mxu0 %v496
        %568 = vmatmul.bf16.gmra.mxu0 %v360
        %v569 = vpop.f32.mrf.mxu0
        %v570 = vadd.f32 0.0, %v569
        %v571 = vpop.f32.mrf.mxu0
        %v572 = vadd.f32 0.0, %v571
        %573 = vdwg.mxu0
        %574 = vmatpush.bf16.msra.mxu0 %v511
        %575 = vmatpush.bf16.msra.mxu0 %v510
        %576 = vmatpush.bf16.msra.mxu0 %v509
        %577 = vmatpush.bf16.msra.mxu0 %v508
        %578 = vmatpush.bf16.msra.mxu0 %v507
        %579 = vmatpush.bf16.msra.mxu0 %v506
        %580 = vmatpush.bf16.msra.mxu0 %v505
        %581 = vmatpush.bf16.msra.mxu0 %v504
        %582 = vmatmul.bf16.gmra.mxu0 %v361
        %v583 = vpop.f32.mrf.mxu0
        %v584 = vadd.f32 %v570, %v583
        %v585 = vpop.f32.mrf.mxu0
        %v586 = vadd.f32 %v572, %v585
        %587 = vdwg.mxu0
        %588 = vmatpush.bf16.msra.mxu0 %v519
        %589 = vmatpush.bf16.msra.mxu0 %v518
        %590 = vmatpush.bf16.msra.mxu0 %v517
        %591 = vmatpush.bf16.msra.mxu0 %v516
        %592 = vmatpush.bf16.msra.mxu0 %v515
        %593 = vmatpush.bf16.msra.mxu0 %v514
        %594 = vmatpush.bf16.msra.mxu0 %v513
        %595 = vmatpush.bf16.msra.mxu0 %v512
        %596 = vmatmul.bf16.gmra.mxu0 %v362
        %v597 = vpop.f32.mrf.mxu0
        %v598 = vadd.f32 %v584, %v597
        %v599 = vpop.f32.mrf.mxu0
        %v600 = vadd.f32 %v586, %v599
        %601 = vdwg.mxu0
        %602 = vmatpush.bf16.msra.mxu0 %v527
        %603 = vmatpush.bf16.msra.mxu0 %v526
        %604 = vmatpush.bf16.msra.mxu0 %v525
        %605 = vmatpush.bf16.msra.mxu0 %v524
        %606 = vmatpush.bf16.msra.mxu0 %v523
        %607 = vmatpush.bf16.msra.mxu0 %v522
        %608 = vmatpush.bf16.msra.mxu0 %v521
        %609 = vmatpush.bf16.msra.mxu0 %v520
        %610 = vmatmul.bf16.gmra.mxu0 %v363
        %v611 = vpop.f32.mrf.mxu0
        %v612 = vadd.f32 %v598, %v611
        %v613 = vpop.f32.mrf.mxu0
        %v614 = vadd.f32 %v600, %v613
        %615 = vdwg.mxu0
        %v616 = vadd.f32 %v278, %v612
        %v617 = vadd.f32 %v279, %v614
        %618 = vst [vmem:[#allocation2] sm:$0xff] %v616
        %619 = vst [vmem:[#allocation2 + $0x8] sm:$0xff] %v617
        %p620 = scmp.eq.s32.totalorder %s23, 1
        // Predicated region
        $region60: #{mlp_forward.2} parent=46 // pred_check
          %p621 = pneg %p620
        $region61: #{mlp_forward.2} parent=46 // pred_check_branch
          %623 = sbr.rel (%p621) target = $region63
        $region62: #{mlp_forward.2} parent=46 // pred_region
          %v624 = vld [vmem:[#allocation2] sm:$0xff]
          %v625 = vld [vmem:[#allocation2 + $0x8] sm:$0xff]
          %v626 = vpack.c.bf16 %v624, %v624
          %v627 = vpack.c.bf16 %v625, %v625
          %628 = vst [vmem:[%s265] sm:$0xf] %v626
          %629 = vst [vmem:[%s265 + $0x4] sm:$0xf] %v627
          %v630 = vadd.f32 %v624, %v625
          %v631 = vrot.slane %v630, 4
          %v632 = vadd.f32 %v630, %v631
          %v633 = vrot.slane %v632, 2
          %v634 = vadd.f32 %v632, %v633
          %v635 = vrot.slane %v634, 1
          %v636 = vadd.f32 %v634, %v635
          %637 = vst [vmem:[%s270] sm:$0x1] %v636
          %v638 = vmul.f32 %v624, %v624
          %v639 = vmul.f32 %v625, %v625
          %v640 = vadd.f32 %v638, %v639
          %v641 = vrot.slane %v640, 4
          %v642 = vadd.f32 %v640, %v641
          %v643 = vrot.slane %v642, 2
          %v644 = vadd.f32 %v642, %v643
          %v645 = vrot.slane %v644, 1
          %v646 = vadd.f32 %v644, %v645
          %647 = vst [vmem:[%s270 + $0x1] sm:$0x1] %v646
        $region63: #{mlp_forward.2} parent=46 // pred_fallthru
          _
        %s648 = smul.u32 2, %s22
        %p649 = scmp.lt.s32.totalorder %s648, 1
        %s650 = scalar_select %p649, %s648, 1
        %s651 = smul.addr %s650, 4
        %s652 = scalar_lea.vmem %s2, %s651
        %p653 = scmp.lt.s32.totalorder %s22, 0
        %s654 = scalar_select %p653, %s22, 0
        %s655 = smul.addr %s654, 8
        %s656 = scalar_lea.vmem %s3, %s655
        // Predicated region
        $region64: #{mlp_forward.2} parent=46 // pred_check
          %p657 = pneg %p102
        $region65: #{mlp_forward.2} parent=46 // pred_check_branch
          %659 = sbr.rel (%p657) target = $region67
        $region66: #{mlp_forward.2} parent=46 // pred_region
          %s660 = smul.u32 2, %s22
        $region67: #{mlp_forward.2} parent=46 // pred_fallthru
          _
        // Predicated region
        $region68: #{mlp_forward.2} parent=46 // pred_check
          %p661 = pneg %p128
        $region69: #{mlp_forward.2} parent=46 // pred_check_branch
          %663 = sbr.rel (%p661) target = $region71
        $region70: #{mlp_forward.2} parent=46 // pred_region
          _
        $region71: #{mlp_forward.2} parent=46 // pred_fallthru
          _
        // Predicated region
        $region72: #{mlp_forward.2} parent=46 // pred_check
          %p664 = pneg %p102
        $region73: #{mlp_forward.2} parent=46 // pred_check_branch
          %666 = sbr.rel (%p664) target = $region75
        $region74: #{mlp_forward.2} parent=46 // pred_region
          %s667 = smul.u32 2, %s22
          %p668 = scmp.lt.s32.totalorder %s667, 1
          %s669 = scalar_select %p668, %s667, 1
          %s670 = smul.addr %s669, 4
          %s671 = scalar_lea.vmem %s2, %s670
        $region75: #{mlp_forward.2} parent=46 // pred_fallthru
          _
        // Predicated region
        $region76: #{mlp_forward.2} parent=46 // pred_check
          %p672 = pneg %p128
        $region77: #{mlp_forward.2} parent=46 // pred_check_branch
          %674 = sbr.rel (%p672) target = $region79
        $region78: #{mlp_forward.2} parent=46 // pred_region
          %p675 = scmp.lt.s32.totalorder %s22, 0
          %s676 = scalar_select %p675, %s22, 0
          %s677 = smul.addr %s676, 8
          %s678 = scalar_lea.vmem %s3, %s677
        $region79: #{mlp_forward.2} parent=46 // pred_fallthru
          _
      $region47: #{mlp_forward.2} parent=5 // pred_fallthru
        _
      %p679 = scmp.le.s32.totalorder 2, %s13
      // Predicated region
      $region80: #{mlp_forward.2} parent=5 // pred_check
        %p680 = pneg %p679
      $region81: #{mlp_forward.2} parent=5 // pred_check_branch
        %682 = sbr.rel (%p680) target = $region83
      $region82: #{mlp_forward.2} parent=5 // pred_region
        %s683 = ssub.s32 %s13, 2
      $region83: #{mlp_forward.2} parent=5 // pred_fallthru
        _
    $region6: #{mlp_forward.2} parent=1 // loop_footer
      %s17 = sadd.s32 1, %s13
    $region7: #{mlp_forward.2} parent=1 // loop_footer_branch
      %12 = sbr.rel target = $region3
    $region8: #{mlp_forward.2} parent=1 // loop_exit
      _
    %684 = vsyncpa [#allocation5], 1
    %s685 = scalar_lea.sflag [#allocation5], 1
    %686 = vsyncpa %s685, 1

</llo_original>
